<compile_context>
chip_gen: v5e
topology: v5e:2x2
jax: 0.10.0
libtpu: 0.0.40
codegen_flags: <defaults>
</compile_context>

<pallas_src>
import jax
import jax.numpy as jnp
from jax import lax
from jax.experimental import pallas as pl
from jax.experimental.pallas import tpu as pltpu

_LANES = 128
_SUBLANES = 8
_BLK_ROWS_MAX = 2048  # 2048*128*4B = 1 MiB per input per pipeline buffer


def _round_up(x, m):
    return ((x + m - 1) // m) * m


def _make_bce_sum_kernel(n_inner, blk_rows, n_total, needs_mask, inv_n):
    def kernel(x_ref, t_ref, o_ref, acc_ref):
        p = pl.program_id(0)
        i = pl.program_id(1)

        @pl.when(i == 0)
        def _():
            acc_ref[...] = jnp.zeros_like(acc_ref)

        x = x_ref[...].astype(jnp.float32)
        t = t_ref[...].astype(jnp.float32)
        # Numerically stable BCE-with-logits (matches PyTorch):
        #   loss = max(x, 0) - x * t + log(1 + exp(-|x|))
        loss = jnp.maximum(x, 0.0) - x * t + jnp.log1p(jnp.exp(-jnp.abs(x)))

        if needs_mask:
            # Zero out contributions from zero-padded tail elements.
            # TODO(synk): flat-index mask uses int32; >2**31-1 elements would
            # need int64 indices or per-row masking.
            row_off = (p * n_inner + i) * blk_rows
            rid = lax.broadcasted_iota(jnp.int32, loss.shape, 0)
            lid = lax.broadcasted_iota(jnp.int32, loss.shape, 1)
            flat_idx = (row_off + rid) * _LANES + lid
            loss = jnp.where(flat_idx < n_total, loss, 0.0)

        # Lane-dense, pure-VPU accumulation; no per-step cross-lane reduce,
        # no per-step masked scalar store.
        acc_ref[...] += loss

        @pl.when(i == n_inner - 1)
        def _():
            # One sublane reduce per outer (parallel) slice + fold in 1/N.
            o_ref[...] = jnp.sum(acc_ref[...], axis=0, keepdims=True) * inv_n

    return kernel


def bce_with_logits_loss(inputs, targets):
    """Mean BCE-with-logits over all elements (PyTorch default reduction)."""
    assert inputs.shape == targets.shape
    n_total = int(inputs.size)

    rows_needed = -(-n_total // _LANES)
    blk_rows = min(_BLK_ROWS_MAX, _round_up(rows_needed, _SUBLANES))
    total_blocks = -(-rows_needed // blk_rows)
    n_par = 2 if total_blocks >= 2 else 1          # shard across TCs on v7x
    n_inner = -(-total_blocks // n_par)
    padded_rows = n_par * n_inner * blk_rows
    padded_elems = padded_rows * _LANES
    needs_mask = padded_elems != n_total

    x_flat = inputs.reshape(-1)
    t_flat = targets.reshape(-1)
    pad = padded_elems - n_total
    if pad:
        x_flat = jnp.pad(x_flat, (0, pad))
        t_flat = jnp.pad(t_flat, (0, pad))
    x2d = x_flat.reshape(padded_rows, _LANES)
    t2d = t_flat.reshape(padded_rows, _LANES)

    kernel = _make_bce_sum_kernel(
        n_inner, blk_rows, n_total, needs_mask, 1.0 / float(n_total))

    out = pl.pallas_call(
        kernel,
        out_shape=jax.ShapeDtypeStruct((n_par, _LANES), jnp.float32),
        grid_spec=pltpu.PrefetchScalarGridSpec(
            num_scalar_prefetch=0,
            grid=(n_par, n_inner),
            in_specs=[
                pl.BlockSpec((blk_rows, _LANES),
                             lambda p, i: (p * n_inner + i, 0)),
                pl.BlockSpec((blk_rows, _LANES),
                             lambda p, i: (p * n_inner + i, 0)),
            ],
            out_specs=pl.BlockSpec((1, _LANES), lambda p, i: (p, 0)),
            scratch_shapes=[pltpu.VMEM((blk_rows, _LANES), jnp.float32)],
        ),
        compiler_params=pltpu.CompilerParams(
            dimension_semantics=("parallel", "arbitrary")),
    )(x2d, t2d)

    # Sum of per-lane, per-core partials (already scaled by 1/N in-kernel).
    return jnp.sum(out).astype(jnp.float32)


def _reference(inputs, targets):
    x = inputs.astype(jnp.float32)
    t = targets.astype(jnp.float32)
    loss = jnp.maximum(x, 0.0) - x * t + jnp.log1p(jnp.exp(-jnp.abs(x)))
    return jnp.mean(loss)


if __name__ == "__main__":
    key = jax.random.PRNGKey(0)
    k1, k2 = jax.random.split(key)
    # Small NCHW-shaped inputs consistent with a segmentation-style BCE loss.
    shape = (2, 4, 16, 16)
    logits = jax.random.normal(k1, shape, dtype=jnp.float32) * 2.0
    targets = (jax.random.uniform(k2, shape) > 0.5).astype(jnp.float32)

    loss = bce_with_logits_loss(logits, targets)
    jax.block_until_ready(loss)

    ref = _reference(logits, targets)
    assert jnp.allclose(loss, ref, atol=1e-5, rtol=1e-5), (loss, ref)

    # Also exercise a non-aligned element count (tail-mask path).
    shape2 = (2, 3, 15, 17)
    logits2 = jax.random.normal(k1, shape2, dtype=jnp.float32) * 2.0
    targets2 = (jax.random.uniform(k2, shape2) > 0.5).astype(jnp.float32)
    loss2 = bce_with_logits_loss(logits2, targets2)
    jax.block_until_ready(loss2)
    assert jnp.allclose(loss2, _reference(logits2, targets2),
                        atol=1e-5, rtol=1e-5), (loss2,)

    print("KERNEL_OK")
</pallas_src>

<mosaic_0001>
module attributes {stable_mosaic.version = 11 : i64} {
  func.func @kernel(%arg0: i32, %arg1: i32, %arg2: memref<16x128xf32, #tpu.memory_space<vmem>>, %arg3: memref<16x128xf32, #tpu.memory_space<vmem>>, %arg4: memref<1x128xf32, #tpu.memory_space<vmem>>, %arg5: memref<16x128xf32, #tpu.memory_space<vmem>>) attributes {dimension_semantics = [#tpu.dimension_semantics<parallel>, #tpu.dimension_semantics<arbitrary>], iteration_bounds = array<i64: 1, 1>, scalar_prefetch = 0 : i64, scratch_operands = 1 : i64, tpu.core_type = #tpu.core_type<tc>, window_params = [{transform_indices = @transform_0, window_bounds = array<i64: 16, 128>}, {transform_indices = @transform_1, window_bounds = array<i64: 16, 128>}, {transform_indices = @transform_2, window_bounds = array<i64: 1, 128>}]} {
    %c0_i32 = arith.constant 0 : i32
    %0 = arith.cmpi eq, %arg1, %c0_i32 : i32
    %1 = arith.extui %0 : i1 to i32
    %c0_i32_0 = arith.constant 0 : i32
    %2 = arith.cmpi ne, %1, %c0_i32_0 : i32
    scf.if %2 {
      %cst_11 = arith.constant 0.000000e+00 : f32
      %21 = vector.broadcast %cst_11 : f32 to vector<16x128xf32>
      %c0_12 = arith.constant 0 : index
      %c0_13 = arith.constant 0 : index
      %22 = vector.load %arg5[%c0_12, %c0_13] : memref<16x128xf32, #tpu.memory_space<vmem>>, vector<16x128xf32>
      tpu.vector_store %arg5[%c0_12, %c0_13], %21 {strides = array<i32>} : memref<16x128xf32, #tpu.memory_space<vmem>>, vector<16x128xf32>,
    } else {
    }
    %c0 = arith.constant 0 : index
    %c0_1 = arith.constant 0 : index
    %3 = vector.load %arg2[%c0, %c0_1] : memref<16x128xf32, #tpu.memory_space<vmem>>, vector<16x128xf32>
    %c0_2 = arith.constant 0 : index
    %c0_3 = arith.constant 0 : index
    %4 = vector.load %arg3[%c0_2, %c0_3] : memref<16x128xf32, #tpu.memory_space<vmem>>, vector<16x128xf32>
    %cst = arith.constant 0.000000e+00 : f32
    %5 = vector.broadcast %cst : f32 to vector<16x128xf32>
    %6 = arith.maximumf %3, %5 : vector<16x128xf32>
    %7 = arith.mulf %3, %4 : vector<16x128xf32>
    %8 = arith.subf %6, %7 : vector<16x128xf32>
    %9 = math.absf %3 : vector<16x128xf32>
    %cst_4 = arith.constant 0.000000e+00 : f32
    %10 = vector.broadcast %cst_4 : f32 to vector<16x128xf32>
    %11 = arith.subf %10, %9 : vector<16x128xf32>
    %12 = math.exp %11 : vector<16x128xf32>
    %13 = math.log1p %12 : vector<16x128xf32>
    %14 = arith.addf %8, %13 : vector<16x128xf32>
    %c0_5 = arith.constant 0 : index
    %c0_6 = arith.constant 0 : index
    %15 = vector.load %arg5[%c0_5, %c0_6] : memref<16x128xf32, #tpu.memory_space<vmem>>, vector<16x128xf32>
    %16 = arith.addf %15, %14 : vector<16x128xf32>
    %c0_7 = arith.constant 0 : index
    %c0_8 = arith.constant 0 : index
    %17 = vector.load %arg5[%c0_7, %c0_8] : memref<16x128xf32, #tpu.memory_space<vmem>>, vector<16x128xf32>
    tpu.vector_store %arg5[%c0_7, %c0_8], %16 {strides = array<i32>} : memref<16x128xf32, #tpu.memory_space<vmem>>, vector<16x128xf32>,
    %c0_i32_9 = arith.constant 0 : i32
    %18 = arith.cmpi eq, %arg1, %c0_i32_9 : i32
    %19 = arith.extui %18 : i1 to i32
    %c0_i32_10 = arith.constant 0 : i32
    %20 = arith.cmpi ne, %19, %c0_i32_10 : i32
    scf.if %20 {
      %c0_11 = arith.constant 0 : index
      %c0_12 = arith.constant 0 : index
      %21 = vector.load %arg5[%c0_11, %c0_12] : memref<16x128xf32, #tpu.memory_space<vmem>>, vector<16x128xf32>
      %cst_13 = arith.constant dense<0.000000e+00> : vector<128xf32>
      %22 = vector.multi_reduction <add>, %21, %cst_13 [0] : vector<16x128xf32> to vector<128xf32>
      %23 = vector.shape_cast %22 : vector<128xf32> to vector<1x128xf32>
      %cst_14 = arith.constant 4.8828125E-4 : f32
      %24 = vector.broadcast %cst_14 : f32 to vector<1x128xf32>
      %25 = arith.mulf %23, %24 : vector<1x128xf32>
      %c0_15 = arith.constant 0 : index
      %c0_16 = arith.constant 0 : index
      %26 = vector.load %arg4[%c0_15, %c0_16] : memref<1x128xf32, #tpu.memory_space<vmem>>, vector<1x128xf32>
      tpu.vector_store %arg4[%c0_15, %c0_16], %25 {strides = array<i32>} : memref<1x128xf32, #tpu.memory_space<vmem>>, vector<1x128xf32>,
    } else {
    }
    return
  }
  func.func @transform_0(%arg0: i32, %arg1: i32) -> (i32, i32) {
    %c1_i32 = arith.constant 1 : i32
    %0 = arith.muli %arg0, %c1_i32 : i32
    %1 = arith.addi %0, %arg1 : i32
    %c0_i32 = arith.constant 0 : i32
    %c0_i32_0 = arith.constant 0 : i32
    return %1, %c0_i32 : i32, i32
  }
  func.func @transform_1(%arg0: i32, %arg1: i32) -> (i32, i32) {
    %c1_i32 = arith.constant 1 : i32
    %0 = arith.muli %arg0, %c1_i32 : i32
    %1 = arith.addi %0, %arg1 : i32
    %c0_i32 = arith.constant 0 : i32
    %c0_i32_0 = arith.constant 0 : i32
    return %1, %c0_i32 : i32, i32
  }
  func.func @transform_2(%arg0: i32, %arg1: i32) -> (i32, i32) {
    %c0_i32 = arith.constant 0 : i32
    %c0_i32_0 = arith.constant 0 : i32
    return %arg0, %c0_i32 : i32, i32
  }
}

</mosaic_0001>

<llo_original>
// kernel: tpu_custom_call.1
$region0: #{tpu_custom_call.1}
  #allocation0 [shape = 'u32[]', space=smem, size = 0x4, offset = 0x4, fixed_abs, tag = 'smem constant byte address 0x4 - core index']
  #allocation1 [shape = 'u32[72,128]{1,0:T(1,128)}', space=vmem, size = 0x9000, scoped, tag = 'internal scratch']
  #allocation2 [shape = 'f32[16,128]{1,0:T(8,128)}', space=vmem, size = 0x2000, scoped, tag = 'scratch operand']
  %s0 = inlined_call_operand.hbm [shape: f32[16,128], index: 0, kind: input, shape index: {}]
  %s1 = inlined_call_operand.hbm [shape: f32[16,128], index: 1, kind: input, shape index: {}]
  %s2 = inlined_call_operand.hbm [shape: f32[1,128], index: 2, kind: output, shape index: {}]
  %s3 = sld [smem:[#allocation0]]
  $region34: #{tpu_custom_call.1} parent=0
    _
  %s5 = ssub.s32 1, %s3
  %s6 = scalar_select 0, %s5, %s3
  $region1: #{tpu_custom_call.1} parent=0
    #allocation3 [shape = 'u8[8192]{0}', space=vmem, size = 0x2000, scoped, tag = 'input window, operand 0, single buffered']
    #allocation4 [shape = 's32[1]{0}', space=sflag, size = 0x4, scoped, tag = 'scoped memory for tpu_custom_call.1']
    #allocation5 [shape = 's32[1]{0}', space=sflag, size = 0x4, scoped, tag = 'scoped memory for tpu_custom_call.1']
    #allocation6 [shape = 'u8[8192]{0}', space=vmem, size = 0x2000, scoped, tag = 'input window, operand 1, single buffered']
    #allocation7 [shape = 's32[1]{0}', space=sflag, size = 0x4, scoped, tag = 'scoped memory for tpu_custom_call.1']
    #allocation8 [shape = 'u8[512]{0}', space=vmem, size = 0x400, scoped, tag = 'output window, operand 0, single buffered']
    %7 = vsyncpa [#allocation4], 0
    %8 = vsyncpa [#allocation7], 0
    %9 = vsyncpa [#allocation5], 0
    // Predicated region
    $region2: #{tpu_custom_call.1} parent=1 // pred_check
      _
    $region3: #{tpu_custom_call.1} parent=1 // pred_check_branch
      %11 = sbr.rel (0) target = $region5
    $region4: #{tpu_custom_call.1} parent=1 // pred_region
      %s12 = sadd.s32 0, 0
      %s13 = smul.u32 2, %s12
      %15 = vsyncadd [#allocation4], 0
      %s16 = smul.addr %s13, 8
      %s17 = scalar_lea.hbm %s0, %s16
      %s18 = sshll.u32 %s17, 4
      %s19 = int_to_ptr.hbm [resolvable:$true] %s18
      %s20 = sshll.u32 [#allocation3], 4
      %s21 = int_to_ptr.vmem [resolvable:$true] %s20
      %26 = dma.hbm_to_vmem [thread:$0]  %s19, 256, %s21, [#allocation4], 128, 128, 8
    $region5: #{tpu_custom_call.1} parent=1 // pred_fallthru
      _
    // Predicated region
    $region6: #{tpu_custom_call.1} parent=1 // pred_check
      _
    $region7: #{tpu_custom_call.1} parent=1 // pred_check_branch
      %28 = sbr.rel (0) target = $region9
    $region8: #{tpu_custom_call.1} parent=1 // pred_region
      %s29 = sadd.s32 0, 0
      %s30 = smul.u32 2, %s29
      %32 = vsyncadd [#allocation7], 0
      %s33 = smul.addr %s30, 8
      %s34 = scalar_lea.hbm %s1, %s33
      %s35 = sshll.u32 %s34, 4
      %s36 = int_to_ptr.hbm [resolvable:$true] %s35
      %s37 = sshll.u32 [#allocation6], 4
      %s38 = int_to_ptr.vmem [resolvable:$true] %s37
      %43 = dma.hbm_to_vmem [thread:$0]  %s36, 256, %s38, [#allocation7], 128, 128, 8
    $region9: #{tpu_custom_call.1} parent=1 // pred_fallthru
      _
    // Predicated region
    $region10: #{tpu_custom_call.1} parent=1 // pred_check
      _
    $region11: #{tpu_custom_call.1} parent=1 // pred_check_branch
      %45 = sbr.rel (0) target = $region13
    $region12: #{tpu_custom_call.1} parent=1 // pred_region
      %47 = dma.done [#allocation4], 256
    $region13: #{tpu_custom_call.1} parent=1 // pred_fallthru
      _
    // Predicated region
    $region14: #{tpu_custom_call.1} parent=1 // pred_check
      _
    $region15: #{tpu_custom_call.1} parent=1 // pred_check_branch
      %49 = sbr.rel (0) target = $region17
    $region16: #{tpu_custom_call.1} parent=1 // pred_region
      %51 = dma.done [#allocation7], 256
    $region17: #{tpu_custom_call.1} parent=1 // pred_fallthru
      _
    %s52 = sadd.s32 0, 0
    %s53 = smul.u32 2, %s52
    %s54 = sadd.s32 0, 0
    %s55 = smul.u32 2, %s54
    %p56 = scmp.eq.s32.totalorder 0, 0
    // Predicated region
    $region18: #{tpu_custom_call.1} parent=1 // pred_check
      %p57 = pneg %p56
    $region19: #{tpu_custom_call.1} parent=1 // pred_check_branch
      %59 = sbr.rel (%p57) target = $region21
    $region20: #{tpu_custom_call.1} parent=1 // pred_region
      %60 = vst [vmem:[#allocation2] sm:$0xff] 0.0
      %61 = vst [vmem:[#allocation2 + $0x8] sm:$0xff] 0.0
    $region21: #{tpu_custom_call.1} parent=1 // pred_fallthru
      _
    %v62 = vld [vmem:[#allocation3] sm:$0xff]
    %v63 = vld [vmem:[#allocation3 + $0x8] sm:$0xff]
    %v64 = vld [vmem:[#allocation6] sm:$0xff]
    %v65 = vld [vmem:[#allocation6 + $0x8] sm:$0xff]
    %v66 = vmax.f32 %v62, 0.0
    %v67 = vmax.f32 %v63, 0.0
    %v68 = vmul.f32 %v62, %v64
    %v69 = vmul.f32 %v63, %v65
    %v70 = vsub.f32 %v66, %v68
    %v71 = vsub.f32 %v67, %v69
    %v72 = vand.u32 2147483647, %v62
    %v73 = vand.u32 2147483647, %v63
    %v74 = vsub.f32 0.0, %v72
    %v75 = vsub.f32 0.0, %v73
    %v76 = vmul.f32 %v74, 1.442695
    %v77 = vpow.pop %v76
    %v78 = vmul.f32 %v75, 1.442695
    %v79 = vpow.pop %v78
    %v80 = vadd.f32 %v77, 1.0
    %v81 = vlog2.pop %v80
    %v82 = vmul.f32 %v81, 0.6931472
    %v83 = vmul.f32 -0.5, %v77
    %v84 = vadd.f32 %v83, 1.0
    %v85 = vmul.f32 %v84, %v77
    %v86 = vand.u32 2147483647, %v77
    %vm87 = vcmp.lt.f32.partialorder %v86, 0.0004427343
    %v88 = vsel %vm87, %v85, %v82
    %v89 = vadd.f32 %v79, 1.0
    %v90 = vlog2.pop %v89
    %v91 = vmul.f32 %v90, 0.6931472
    %v92 = vmul.f32 -0.5, %v79
    %v93 = vadd.f32 %v92, 1.0
    %v94 = vmul.f32 %v93, %v79
    %v95 = vand.u32 2147483647, %v79
    %vm96 = vcmp.lt.f32.partialorder %v95, 0.0004427343
    %v97 = vsel %vm96, %v94, %v91
    %v98 = vadd.f32 %v70, %v88
    %v99 = vadd.f32 %v71, %v97
    %v100 = vld [vmem:[#allocation2] sm:$0xff]
    %v101 = vld [vmem:[#allocation2 + $0x8] sm:$0xff]
    %v102 = vadd.f32 %v100, %v98
    %v103 = vadd.f32 %v101, %v99
    %104 = vst [vmem:[#allocation2] sm:$0xff] %v102
    %105 = vst [vmem:[#allocation2 + $0x8] sm:$0xff] %v103
    // Predicated region
    $region22: #{tpu_custom_call.1} parent=1 // pred_check
      %p106 = pneg %p56
    $region23: #{tpu_custom_call.1} parent=1 // pred_check_branch
      %108 = sbr.rel (%p106) target = $region25
    $region24: #{tpu_custom_call.1} parent=1 // pred_region
      %v109 = vld [vmem:[#allocation2] sm:$0xff]
      %v110 = vld [vmem:[#allocation2 + $0x8] sm:$0xff]
      %v111 = vadd.f32 %v109, %v110
      %v112 = vrot.slane %v111, 4
      %v113 = vadd.f32 %v111, %v112
      %v114 = vrot.slane %v113, 2
      %v115 = vadd.f32 %v113, %v114
      %v116 = vrot.slane %v115, 1
      %v117 = vadd.f32 %v115, %v116
      %v118 = vmul.f32 %v117, 0.00048828125
      %119 = vst [vmem:[#allocation8] sm:$0x1] %v118
    $region25: #{tpu_custom_call.1} parent=1 // pred_fallthru
      _
    // Predicated region
    $region26: #{tpu_custom_call.1} parent=1 // pred_check
      _
    $region27: #{tpu_custom_call.1} parent=1 // pred_check_branch
      %121 = sbr.rel (0) target = $region29
    $region28: #{tpu_custom_call.1} parent=1 // pred_region
      %123 = vsyncadd [#allocation5], 0
      %s125 = sshll.u32 [#allocation8], 4
      %s126 = int_to_ptr.vmem [resolvable:$true] %s125
      %s127 = sshll.u32 %s2, 4
      %s128 = int_to_ptr.hbm [resolvable:$true] %s127
      %130 = dma.vmem_to_hbm [thread:$0]  %s126, 16, %s128, [#allocation5]
    $region29: #{tpu_custom_call.1} parent=1 // pred_fallthru
      _
    // Predicated region
    $region30: #{tpu_custom_call.1} parent=1 // pred_check
      _
    $region31: #{tpu_custom_call.1} parent=1 // pred_check_branch
      %132 = sbr.rel (0) target = $region33
    $region32: #{tpu_custom_call.1} parent=1 // pred_region
      %134 = dma.done [#allocation5], 16
    $region33: #{tpu_custom_call.1} parent=1 // pred_fallthru
      _
    %135 = vsyncpa [#allocation4], 1
    %136 = vsyncpa [#allocation7], 1
    %137 = vsyncpa [#allocation5], 1

</llo_original>
